<compile_context>
chip_gen: v7x
topology: tpu7x:2x2x1
jax: 0.10.0
libtpu: 0.0.40
codegen_flags: <defaults>
</compile_context>

<pallas_src>
import functools

import jax
import jax.numpy as jnp
from jax.experimental import pallas as pl
from jax.experimental.pallas import tpu as pltpu


def _cdiv(a, b):
    return -(-a // b)


def _vmem_capacity_bytes():
    try:
        return int(pltpu.get_tpu_info().vmem_capacity_bytes)
    except Exception:
        return 64 << 20  # conservative (v7x per-TC VMEM)


# ---------------------------------------------------------------------------
# Fused single-pass kernel: pool + channel MLP + excite on one (Nb, C, HW) slab.
# ---------------------------------------------------------------------------
def _se_kernel(x_ref, w1_ref, b1_ref, w2_ref, b2_ref, o_ref, *, inv_hw):
    # x_ref: (Nb, C, HW)   w1_ref: (S, C)  b1_ref: (1, S)
    # w2_ref: (C, S)       b2_ref: (1, C)  o_ref: (Nb, C, HW)
    x = x_ref[...]                                            # native dtype, no upcast copy

    # squeeze: global average pool over the lane axis, f32 accumulation
    mean = jnp.sum(x, axis=2, dtype=jnp.float32) * inv_hw     # (Nb, C) lane-dense

    w1 = w1_ref[...].astype(jnp.float32)                      # (S, C)
    w2 = w2_ref[...].astype(jnp.float32)                      # (C, S)
    use_mxu = mean.shape[1] >= 256                            # static: big-channel SE only

    # conv_reduce (1x1 conv == channel contraction, C->S) + SiLU
    if use_mxu:
        s = jax.lax.dot_general(mean, w1, (((1,), (1,)), ((), ())),
                                preferred_element_type=jnp.float32)
    else:
        s = jnp.sum(mean[:, None, :] * w1[None, :, :], axis=-1)   # VPU/XLU, MXU would be >99% padded
    s = s + b1_ref[...].astype(jnp.float32)
    s = s * jax.nn.sigmoid(s)                                 # SiLU

    # conv_expand (1x1 conv, S->C) + Sigmoid
    if use_mxu:
        e = jax.lax.dot_general(s, w2, (((1,), (1,)), ((), ())),
                                preferred_element_type=jnp.float32)
    else:
        e = jnp.sum(s[:, None, :] * w2[None, :, :], axis=-1)      # (Nb, C)
    e = e + b2_ref[...].astype(jnp.float32)
    e = jax.nn.sigmoid(e)

    # excite in x's native dtype (exact for f32; for bf16/fp8 inputs the per-channel
    # scale is rounded to x.dtype, ~1 ulp vs an f32-scale reference)
    o_ref[...] = x * e.astype(x.dtype)[:, :, None]


def _choose_batch_block(n, per_image_bytes, target_bytes):
    """Pick batch-fusion Nb (block = Nb images) targeting `target_bytes`, preferring
    >= 2 grid steps (both v7x TCs busy; ~free on 1-TC chips) and an even step count
    (load balance across 2 TCs).  Nb need not divide N (trailing OOB block is inert)."""
    nb = max(1, min(n, target_bytes // max(per_image_bytes, 1)))
    if n >= 2:
        nb = min(nb, _cdiv(n, 2))            # at least 2 grid steps
    steps = _cdiv(n, nb)
    if steps > 2 and steps % 2 == 1:         # try to balance across 2 TensorCores
        alt_nb = max(1, _cdiv(n, steps + 1))
        alt_steps = _cdiv(n, alt_nb)
        if alt_steps % 2 == 0:
            nb, steps = alt_nb, alt_steps
    return nb, steps


def _se_fused(x2, w1, b1r, w2, b2r, target_block_bytes, vmem_cap):
    N, C, HW = x2.shape
    S = w1.shape[0]
    itemsize = x2.dtype.itemsize
    per_image_bytes = C * HW * itemsize

    nb, steps = _choose_batch_block(N, per_image_bytes, target_block_bytes)
    block_bytes = nb * per_image_bytes
    # in+out double-buffered (4x block) + reduce temporaries + headroom, under the
    # per-generation cap (<=40 MiB of 64 MiB on v7x, <=80 MiB of 128 MiB on v5e/v6e).
    vmem_limit = int(min(vmem_cap * 5 // 8, max(16 << 20, 10 * block_bytes)))

    cost = pl.CostEstimate(
        flops=int(3 * N * C * HW + 4 * N * S * C),
        transcendentals=int(N * (2 * S + C)),
        bytes_accessed=int(2 * N * C * HW * itemsize + (2 * S * C + S + C) * 4),
    )

    return pl.pallas_call(
        functools.partial(_se_kernel, inv_hw=1.0 / HW),
        out_shape=jax.ShapeDtypeStruct((N, C, HW), x2.dtype),
        grid_spec=pltpu.PrefetchScalarGridSpec(
            num_scalar_prefetch=0,
            grid=(steps,),
            in_specs=[
                pl.BlockSpec((nb, C, HW), lambda n: (n, 0, 0)),  # x slab (full C, HW -> no pad needed)
                pl.BlockSpec((S, C), lambda n: (0, 0)),          # conv_reduce weight
                pl.BlockSpec((1, S), lambda n: (0, 0)),          # conv_reduce bias (row)
                pl.BlockSpec((C, S), lambda n: (0, 0)),          # conv_expand weight
                pl.BlockSpec((1, C), lambda n: (0, 0)),          # conv_expand bias (row)
            ],
            out_specs=pl.BlockSpec((nb, C, HW), lambda n: (n, 0, 0)),
        ),
        compiler_params=pltpu.CompilerParams(
            dimension_semantics=("parallel",),
            vmem_limit_bytes=vmem_limit,
        ),
        cost_estimate=cost,
    )(x2, w1, b1r, w2, b2r)


# ---------------------------------------------------------------------------
# Spatially-split fallback (one image does not fit the VMEM block budget):
#   pass 1: pooled sums with a resident f32 accumulator over HW chunks
#   pass 2: excite multiply (re-reads x once; only used for oversized images)
# ---------------------------------------------------------------------------
def _pool_kernel(x_ref, sum_ref, *, hw):
    # x_ref: (1, C, chunk)   sum_ref: (1, C, 1) f32, resident across the HW grid axis
    h = pl.program_id(1)

    @pl.when(h == 0)
    def _():
        sum_ref[...] = jnp.zeros_like(sum_ref)

    x = x_ref[...]
    chunk = x.shape[2]
    # Mask lanes past the true HW (last chunk may extend OOB, where block padding is undefined).
    idx = jax.lax.broadcasted_iota(jnp.int32, x.shape, 2) + h * chunk
    x32 = jnp.where(idx < hw, x.astype(jnp.float32), 0.0)
    sum_ref[...] += jnp.sum(x32, axis=2, keepdims=True)


def _excite_kernel(x_ref, sc_ref, o_ref):
    x = x_ref[...]
    o_ref[...] = x * sc_ref[...].astype(x.dtype)   # (1,C,chunk) * (1,C,1)


def _se_split(x2, w1, b1r, w2, b2r, target_block_bytes, vmem_cap):
    N, C, HW = x2.shape
    itemsize = x2.dtype.itemsize

    chunk = max(128, (target_block_bytes // max(C * itemsize, 1)) // 128 * 128)
    chunk = min(chunk, ((HW + 127) // 128) * 128)
    hw_steps = _cdiv(HW, chunk)
    block_bytes = C * chunk * itemsize
    vmem_limit = int(min(vmem_cap * 5 // 8, max(16 << 20, 10 * block_bytes)))

    # Pass 1: pooled spatial sums, accumulated across the (arbitrary, last) HW axis.
    sums = pl.pallas_call(
        functools.partial(_pool_kernel, hw=HW),
        out_shape=jax.ShapeDtypeStruct((N, C, 1), jnp.float32),
        grid_spec=pltpu.PrefetchScalarGridSpec(
            num_scalar_prefetch=0,
            grid=(N, hw_steps),
            in_specs=[pl.BlockSpec((1, C, chunk), lambda n, h: (n, 0, h))],
            out_specs=pl.BlockSpec((1, C, 1), lambda n, h: (n, 0, 0)),
        ),
        compiler_params=pltpu.CompilerParams(
            dimension_semantics=("parallel", "arbitrary"),
            vmem_limit_bytes=vmem_limit,
        ),
    )(x2)

    # Tiny channel MLP in plain JAX (N*(S+C) elements -> negligible next to the HBM passes).
    mean = sums[:, :, 0] / HW                                             # (N, C) f32
    s = jax.lax.dot_general(mean, w1.astype(jnp.float32),
                            (((1,), (1,)), ((), ())),
                            preferred_element_type=jnp.float32) + b1r.astype(jnp.float32)
    s = s * jax.nn.sigmoid(s)
    e = jax.lax.dot_general(s, w2.astype(jnp.float32),
                            (((1,), (1,)), ((), ())),
                            preferred_element_type=jnp.float32) + b2r.astype(jnp.float32)
    scale = jax.nn.sigmoid(e)[:, :, None]                                 # (N, C, 1) f32

    # Pass 2: excite multiply over the same HW chunks.
    return pl.pallas_call(
        _excite_kernel,
        out_shape=jax.ShapeDtypeStruct((N, C, HW), x2.dtype),
        grid_spec=pltpu.PrefetchScalarGridSpec(
            num_scalar_prefetch=0,
            grid=(N, hw_steps),
            in_specs=[
                pl.BlockSpec((1, C, chunk), lambda n, h: (n, 0, h)),
                pl.BlockSpec((1, C, 1), lambda n, h: (n, 0, 0)),
            ],
            out_specs=pl.BlockSpec((1, C, chunk), lambda n, h: (n, 0, h)),
        ),
        compiler_params=pltpu.CompilerParams(
            dimension_semantics=("parallel", "parallel"),
            vmem_limit_bytes=vmem_limit,
        ),
    )(x2, scale)


# ---------------------------------------------------------------------------
# Public wrapper
# ---------------------------------------------------------------------------
def squeeze_excite(x, w1, b1, w2, b2, *, target_block_bytes=None, max_block_bytes=None):
    """x: (N, C, H, W) ; w1: (S, C), b1: (S,), w2: (C, S), b2: (C,). Returns x's shape/dtype."""
    N, C, H, W = x.shape
    S = w1.shape[0]
    HW = H * W
    x2 = x.reshape(N, C, HW)          # no padding: block last dims == full (C, HW)

    vmem_cap = _vmem_capacity_bytes()
    if target_block_bytes is None:
        # ~4 MiB blocks on v7x (64 MiB VMEM), ~8 MiB on v5e/v6e (128 MiB)
        target_block_bytes = max(1 << 20, vmem_cap // 16)
    if max_block_bytes is None:
        max_block_bytes = vmem_cap // 10
    target_block_bytes = min(target_block_bytes, max_block_bytes)

    b1r = b1.reshape(1, S)            # lane-dense row vectors
    b2r = b2.reshape(1, C)

    per_image_bytes = C * HW * x2.dtype.itemsize
    if per_image_bytes <= max_block_bytes:
        out = _se_fused(x2, w1, b1r, w2, b2r, target_block_bytes, vmem_cap)
    else:
        out = _se_split(x2, w1, b1r, w2, b2r, target_block_bytes, vmem_cap)
    return out.reshape(N, C, H, W)


def reference_se(x, w1, b1, w2, b2):
    """Pure-JAX reference matching the PyTorch forward."""
    mean = jnp.mean(x, axis=(2, 3), keepdims=True)                   # (N, C, 1, 1)
    s = jnp.einsum("nchw,sc->nshw", mean, w1) + b1[None, :, None, None]
    s = s * jax.nn.sigmoid(s)                                        # SiLU
    e = jnp.einsum("nshw,cs->nchw", s, w2) + b2[None, :, None, None]
    e = jax.nn.sigmoid(e)
    return e * x


if __name__ == "__main__":
    # Module config: input_c=16, expand_c=32, se_ratio=0.25 -> squeeze_c=4
    input_c, expand_c = 16, 32
    squeeze_c = int(input_c * 0.25)           # = 4
    N, H, W = 2, 16, 16                       # x has expand_c channels (NCHW)

    key = jax.random.PRNGKey(0)
    kx, k1, k2, k3, k4 = jax.random.split(key, 5)

    x = jax.random.normal(kx, (N, expand_c, H, W), dtype=jnp.float32)
    # Deterministic synthetic parameters (not loaded from a checkpoint).
    w1 = jax.random.normal(k1, (squeeze_c, expand_c), dtype=jnp.float32) * 0.1
    b1 = jax.random.normal(k2, (squeeze_c,), dtype=jnp.float32) * 0.1
    w2 = jax.random.normal(k3, (expand_c, squeeze_c), dtype=jnp.float32) * 0.1
    b2 = jax.random.normal(k4, (expand_c,), dtype=jnp.float32) * 0.1

    y_ref = reference_se(x, w1, b1, w2, b2)

    # Primary fused single-pass path.
    y = jax.block_until_ready(squeeze_excite(x, w1, b1, w2, b2))
    assert jnp.allclose(y, y_ref, atol=1e-5, rtol=1e-5), "fused path mismatch vs reference"

    # Spatially-split fallback path (used when one image exceeds the VMEM block budget);
    # forced here with a tiny budget so the fallback stays exercised and correct.
    y2 = jax.block_until_ready(
        squeeze_excite(x, w1, b1, w2, b2,
                       target_block_bytes=8 * 1024, max_block_bytes=8 * 1024))
    assert jnp.allclose(y2, y_ref, atol=1e-5, rtol=1e-5), "split path mismatch vs reference"

    print("KERNEL_OK")
</pallas_src>

<mosaic_0001>
module attributes {stable_mosaic.version = 11 : i64} {
  func.func @_se_kernel(%arg0: i32, %arg1: memref<1x32x256xf32, #tpu.memory_space<vmem>>, %arg2: memref<4x32xf32, #tpu.memory_space<vmem>>, %arg3: memref<1x4xf32, #tpu.memory_space<vmem>>, %arg4: memref<32x4xf32, #tpu.memory_space<vmem>>, %arg5: memref<1x32xf32, #tpu.memory_space<vmem>>, %arg6: memref<1x32x256xf32, #tpu.memory_space<vmem>>) attributes {dimension_semantics = [#tpu.dimension_semantics<parallel>], iteration_bounds = array<i64: 2>, scalar_prefetch = 0 : i64, scratch_operands = 0 : i64, tpu.core_type = #tpu.core_type<tc>, window_params = [{transform_indices = @transform_0, window_bounds = array<i64: 1, 32, 256>}, {pipeline_mode = #tpu.pipeline_mode<synchronous>, transform_indices = @transform_1, window_bounds = array<i64: 4, 32>}, {pipeline_mode = #tpu.pipeline_mode<synchronous>, transform_indices = @transform_2, window_bounds = array<i64: 1, 4>}, {pipeline_mode = #tpu.pipeline_mode<synchronous>, transform_indices = @transform_3, window_bounds = array<i64: 32, 4>}, {pipeline_mode = #tpu.pipeline_mode<synchronous>, transform_indices = @transform_4, window_bounds = array<i64: 1, 32>}, {transform_indices = @transform_5, window_bounds = array<i64: 1, 32, 256>}]} {
    %c0 = arith.constant 0 : index
    %c0_0 = arith.constant 0 : index
    %c0_1 = arith.constant 0 : index
    %0 = vector.load %arg1[%c0, %c0_0, %c0_1] : memref<1x32x256xf32, #tpu.memory_space<vmem>>, vector<1x32x256xf32>
    %cst = arith.constant dense<0.000000e+00> : vector<1x32xf32>
    %1 = vector.multi_reduction <add>, %0, %cst [2] : vector<1x32x256xf32> to vector<1x32xf32>
    %cst_2 = arith.constant 3.906250e-03 : f32
    %2 = vector.broadcast %cst_2 : f32 to vector<1x32xf32>
    %3 = arith.mulf %1, %2 : vector<1x32xf32>
    %c0_3 = arith.constant 0 : index
    %c0_4 = arith.constant 0 : index
    %4 = vector.load %arg2[%c0_3, %c0_4] : memref<4x32xf32, #tpu.memory_space<vmem>>, vector<4x32xf32>
    %c0_5 = arith.constant 0 : index
    %c0_6 = arith.constant 0 : index
    %5 = vector.load %arg4[%c0_5, %c0_6] : memref<32x4xf32, #tpu.memory_space<vmem>>, vector<32x4xf32>
    %6 = vector.shape_cast %3 : vector<1x32xf32> to vector<1x1x32xf32>
    %7 = vector.shape_cast %4 : vector<4x32xf32> to vector<1x4x32xf32>
    %8 = vector.broadcast %6 : vector<1x1x32xf32> to vector<1x4x32xf32>
    %9 = arith.mulf %8, %7 : vector<1x4x32xf32>
    %cst_7 = arith.constant dense<0.000000e+00> : vector<1x4xf32>
    %10 = vector.multi_reduction <add>, %9, %cst_7 [2] : vector<1x4x32xf32> to vector<1x4xf32>
    %c0_8 = arith.constant 0 : index
    %c0_9 = arith.constant 0 : index
    %11 = vector.load %arg3[%c0_8, %c0_9] : memref<1x4xf32, #tpu.memory_space<vmem>>, vector<1x4xf32>
    %12 = arith.addf %10, %11 : vector<1x4xf32>
    %13 = arith.negf %12 : vector<1x4xf32>
    %14 = math.exp %13 : vector<1x4xf32>
    %cst_10 = arith.constant 1.000000e+00 : f32
    %15 = vector.broadcast %cst_10 : f32 to vector<1x4xf32>
    %16 = arith.addf %15, %14 : vector<1x4xf32>
    %17 = arith.divf %15, %16 : vector<1x4xf32>
    %18 = arith.mulf %12, %17 : vector<1x4xf32>
    %19 = vector.shape_cast %18 : vector<1x4xf32> to vector<1x1x4xf32>
    %20 = vector.shape_cast %5 : vector<32x4xf32> to vector<1x32x4xf32>
    %21 = vector.broadcast %19 : vector<1x1x4xf32> to vector<1x32x4xf32>
    %22 = arith.mulf %21, %20 : vector<1x32x4xf32>
    %cst_11 = arith.constant dense<0.000000e+00> : vector<1x32xf32>
    %23 = vector.multi_reduction <add>, %22, %cst_11 [2] : vector<1x32x4xf32> to vector<1x32xf32>
    %c0_12 = arith.constant 0 : index
    %c0_13 = arith.constant 0 : index
    %24 = vector.load %arg5[%c0_12, %c0_13] : memref<1x32xf32, #tpu.memory_space<vmem>>, vector<1x32xf32>
    %25 = arith.addf %23, %24 : vector<1x32xf32>
    %26 = arith.negf %25 : vector<1x32xf32>
    %27 = math.exp %26 : vector<1x32xf32>
    %cst_14 = arith.constant 1.000000e+00 : f32
    %28 = vector.broadcast %cst_14 : f32 to vector<1x32xf32>
    %29 = arith.addf %28, %27 : vector<1x32xf32>
    %30 = arith.divf %28, %29 : vector<1x32xf32>
    %31 = vector.shape_cast %30 : vector<1x32xf32> to vector<1x32x1xf32>
    %32 = vector.broadcast %31 : vector<1x32x1xf32> to vector<1x32x256xf32>
    %33 = arith.mulf %0, %32 : vector<1x32x256xf32>
    %c0_15 = arith.constant 0 : index
    %c0_16 = arith.constant 0 : index
    %c0_17 = arith.constant 0 : index
    %34 = vector.load %arg6[%c0_15, %c0_16, %c0_17] : memref<1x32x256xf32, #tpu.memory_space<vmem>>, vector<1x32x256xf32>
    tpu.vector_store %arg6[%c0_15, %c0_16, %c0_17], %33 {strides = array<i32>} : memref<1x32x256xf32, #tpu.memory_space<vmem>>, vector<1x32x256xf32>,
    return
  }
  func.func @transform_0(%arg0: i32) -> (i32, i32, i32) {
    %c0_i32 = arith.constant 0 : i32
    %c0_i32_0 = arith.constant 0 : i32
    %c0_i32_1 = arith.constant 0 : i32
    return %arg0, %c0_i32, %c0_i32_0 : i32, i32, i32
  }
  func.func @transform_1(%arg0: i32) -> (i32, i32) {
    %c0_i32 = arith.constant 0 : i32
    %c0_i32_0 = arith.constant 0 : i32
    %c0_i32_1 = arith.constant 0 : i32
    return %c0_i32, %c0_i32_0 : i32, i32
  }
  func.func @transform_2(%arg0: i32) -> (i32, i32) {
    %c0_i32 = arith.constant 0 : i32
    %c0_i32_0 = arith.constant 0 : i32
    %c0_i32_1 = arith.constant 0 : i32
    return %c0_i32, %c0_i32_0 : i32, i32
  }
  func.func @transform_3(%arg0: i32) -> (i32, i32) {
    %c0_i32 = arith.constant 0 : i32
    %c0_i32_0 = arith.constant 0 : i32
    %c0_i32_1 = arith.constant 0 : i32
    return %c0_i32, %c0_i32_0 : i32, i32
  }
  func.func @transform_4(%arg0: i32) -> (i32, i32) {
    %c0_i32 = arith.constant 0 : i32
    %c0_i32_0 = arith.constant 0 : i32
    %c0_i32_1 = arith.constant 0 : i32
    return %c0_i32, %c0_i32_0 : i32, i32
  }
  func.func @transform_5(%arg0: i32) -> (i32, i32, i32) {
    %c0_i32 = arith.constant 0 : i32
    %c0_i32_0 = arith.constant 0 : i32
    %c0_i32_1 = arith.constant 0 : i32
    return %arg0, %c0_i32, %c0_i32_0 : i32, i32, i32
  }
}

</mosaic_0001>

<llo_original>
// kernel: tpu_custom_call.1
$region0: #{tpu_custom_call.1}
  #allocation0 [shape = 'u32[]', space=smem, size = 0x4, offset = 0x4, fixed_abs, tag = 'smem constant byte address 0x4 - core index']
  #allocation1 [shape = 'u32[144,128]{1,0:T(1,128)}', space=vmem, size = 0x12000, scoped, tag = 'internal scratch']
  %s0 = inlined_call_operand.hbm [shape: f32[2,32,256], index: 0, kind: input, shape index: {}]
  %s1 = inlined_call_operand.vmem [shape: f32[4,32], index: 1, kind: input, shape index: {}]
  %s2 = inlined_call_operand.vmem [shape: f32[1,4], index: 2, kind: input, shape index: {}]
  %s3 = inlined_call_operand.vmem [shape: f32[32,4], index: 3, kind: input, shape index: {}]
  %s4 = inlined_call_operand.vmem [shape: f32[1,32], index: 4, kind: input, shape index: {}]
  %s5 = inlined_call_operand.hbm [shape: f32[2,32,256], index: 5, kind: output, shape index: {}]
  %s6 = sld [smem:[#allocation0]]
  $region57: #{tpu_custom_call.1} parent=0
    _
  %s8 = ssub.s32 1, %s6
  %s9 = scalar_select 0, %s8, %s6
  $region1: #{tpu_custom_call.1} parent=0
    #allocation2 [shape = 'u8[65536]{0}', space=vmem, size = 0x10000, scoped, tag = 'input window, operand 0']
    #allocation3 [shape = 's32[2]{0}', space=sflag, size = 0x8, scoped, tag = 'scoped memory for tpu_custom_call.1']
    #allocation4 [shape = 's32[2]{0}', space=sflag, size = 0x8, scoped, tag = 'scoped memory for tpu_custom_call.1']
    #allocation5 [shape = 'u8[65536]{0}', space=vmem, size = 0x10000, scoped, tag = 'output window, operand 0']
    %10 = vsyncpa [#allocation3], 0
    %s11 = scalar_lea.sflag [#allocation3], 1
    %12 = vsyncpa %s11, 0
    %13 = vsyncpa [#allocation4], 0
    %s14 = scalar_lea.sflag [#allocation4], 1
    %15 = vsyncpa %s14, 0
    loop: start=0, step=1, limit=4
    $region2: #{tpu_custom_call.1} parent=1 // loop_pre_header
      _
    $region3: #{tpu_custom_call.1} parent=1 // loop_header
      %s17 = sphi 0, %s21
      %p18 = scmp.ge.s32.totalorder %s17, 4
      %s27 = sphi 0, %s29
      %s30 = sphi 0, %s27
      %s31 = sphi 0, %s30
      %s47 = sphi 0, %s31
      %s51 = sphi 0, %s51
      %s53 = sphi 0, %s51
      %s54 = sphi 0, %s53
      %s68 = sphi 0, %s54
      %s72 = sphi 0, %s72
      %s74 = sphi 0, %s72
      %s75 = sphi 0, %s74
      %s89 = sphi 0, %s75
      %s93 = sphi 0, %s93
      %s95 = sphi 0, %s93
      %s96 = sphi 0, %s95
      %s110 = sphi 0, %s96
      %s114 = sphi 0, %s114
      %s116 = sphi 0, %s114
      %s117 = sphi 0, %s116
      %s131 = sphi 0, %s117
      %s137 = sphi 0, %s139
      %s140 = sphi 0, %s137
      %s141 = sphi 0, %s140
      %s157 = sphi 0, %s141
    $region4: #{tpu_custom_call.1} parent=1 // loop_header_branch
      %20 = sbr.rel (%p18) target = $region8
    $region5: #{tpu_custom_call.1} parent=1 // loop_body
      %s22 = ssub.s32 %s17, 1
      %s23 = ssub.s32 %s17, 2
      %s24 = sadd.s32 %s17, 1
      %s25 = ssub.s32 %s17, %s24
      %p26 = scmp.eq.s32.totalorder %s25, 0
      %s28 = sadd.s32 %s27, 1
      %s29 = scalar_select %p26, %s27, %s28
      %p32 = pneg %p26
      %p33 = scmp.eq.s32.totalorder %s17, 1
      %p34 = por %p32, %p33
      %p35 = scmp.ne.s32.totalorder %s27, %s30
      %p36 = scmp.eq.s32.totalorder %s17, 0
      %p37 = por %p35, %p36
      %p38 = scmp.ne.s32.totalorder %s27, %s30
      %p39 = scmp.eq.s32.totalorder %s22, 1
      %p40 = por %p38, %p39
      %p41 = scmp.ne.s32.totalorder %s30, %s31
      %p42 = scmp.eq.s32.totalorder %s22, 0
      %p43 = por %p41, %p42
      %p44 = scmp.ne.s32.totalorder %s30, %s31
      %p45 = scmp.eq.s32.totalorder %s23, 1
      %p46 = por %p44, %p45
      %p48 = scmp.ne.s32.totalorder %s31, %s47
      %p49 = scmp.eq.s32.totalorder %s23, 0
      %p50 = por %p48, %p49
      %s52 = sadd.s32 %s51, 1
      %p55 = scmp.eq.s32.totalorder %s17, 1
      %p56 = scmp.ne.s32.totalorder %s51, %s53
      %p57 = scmp.eq.s32.totalorder %s17, 0
      %p58 = por %p56, %p57
      %p59 = scmp.ne.s32.totalorder %s51, %s53
      %p60 = scmp.eq.s32.totalorder %s22, 1
      %p61 = por %p59, %p60
      %p62 = scmp.ne.s32.totalorder %s53, %s54
      %p63 = scmp.eq.s32.totalorder %s22, 0
      %p64 = por %p62, %p63
      %p65 = scmp.ne.s32.totalorder %s53, %s54
      %p66 = scmp.eq.s32.totalorder %s23, 1
      %p67 = por %p65, %p66
      %p69 = scmp.ne.s32.totalorder %s54, %s68
      %p70 = scmp.eq.s32.totalorder %s23, 0
      %p71 = por %p69, %p70
      %s73 = sadd.s32 %s72, 1
      %p76 = scmp.eq.s32.totalorder %s17, 1
      %p77 = scmp.ne.s32.totalorder %s72, %s74
      %p78 = scmp.eq.s32.totalorder %s17, 0
      %p79 = por %p77, %p78
      %p80 = scmp.ne.s32.totalorder %s72, %s74
      %p81 = scmp.eq.s32.totalorder %s22, 1
      %p82 = por %p80, %p81
      %p83 = scmp.ne.s32.totalorder %s74, %s75
      %p84 = scmp.eq.s32.totalorder %s22, 0
      %p85 = por %p83, %p84
      %p86 = scmp.ne.s32.totalorder %s74, %s75
      %p87 = scmp.eq.s32.totalorder %s23, 1
      %p88 = por %p86, %p87
      %p90 = scmp.ne.s32.totalorder %s75, %s89
      %p91 = scmp.eq.s32.totalorder %s23, 0
      %p92 = por %p90, %p91
      %s94 = sadd.s32 %s93, 1
      %p97 = scmp.eq.s32.totalorder %s17, 1
      %p98 = scmp.ne.s32.totalorder %s93, %s95
      %p99 = scmp.eq.s32.totalorder %s17, 0
      %p100 = por %p98, %p99
      %p101 = scmp.ne.s32.totalorder %s93, %s95
      %p102 = scmp.eq.s32.totalorder %s22, 1
      %p103 = por %p101, %p102
      %p104 = scmp.ne.s32.totalorder %s95, %s96
      %p105 = scmp.eq.s32.totalorder %s22, 0
      %p106 = por %p104, %p105
      %p107 = scmp.ne.s32.totalorder %s95, %s96
      %p108 = scmp.eq.s32.totalorder %s23, 1
      %p109 = por %p107, %p108
      %p111 = scmp.ne.s32.totalorder %s96, %s110
      %p112 = scmp.eq.s32.totalorder %s23, 0
      %p113 = por %p111, %p112
      %s115 = sadd.s32 %s114, 1
      %p118 = scmp.eq.s32.totalorder %s17, 1
      %p119 = scmp.ne.s32.totalorder %s114, %s116
      %p120 = scmp.eq.s32.totalorder %s17, 0
      %p121 = por %p119, %p120
      %p122 = scmp.ne.s32.totalorder %s114, %s116
      %p123 = scmp.eq.s32.totalorder %s22, 1
      %p124 = por %p122, %p123
      %p125 = scmp.ne.s32.totalorder %s116, %s117
      %p126 = scmp.eq.s32.totalorder %s22, 0
      %p127 = por %p125, %p126
      %p128 = scmp.ne.s32.totalorder %s116, %s117
      %p129 = scmp.eq.s32.totalorder %s23, 1
      %p130 = por %p128, %p129
      %p132 = scmp.ne.s32.totalorder %s117, %s131
      %p133 = scmp.eq.s32.totalorder %s23, 0
      %p134 = por %p132, %p133
      %s135 = ssub.s32 %s17, %s24
      %p136 = scmp.eq.s32.totalorder %s135, 0
      %s138 = sadd.s32 %s137, 1
      %s139 = scalar_select %p136, %s137, %s138
      %p142 = pneg %p136
      %p143 = scmp.eq.s32.totalorder %s17, 1
      %p144 = por %p142, %p143
      %p145 = scmp.ne.s32.totalorder %s137, %s140
      %p146 = scmp.eq.s32.totalorder %s17, 0
      %p147 = por %p145, %p146
      %p148 = scmp.ne.s32.totalorder %s137, %s140
      %p149 = scmp.eq.s32.totalorder %s22, 1
      %p150 = por %p148, %p149
      %p151 = scmp.ne.s32.totalorder %s140, %s141
      %p152 = scmp.eq.s32.totalorder %s22, 0
      %p153 = por %p151, %p152
      %p154 = scmp.ne.s32.totalorder %s140, %s141
      %p155 = scmp.eq.s32.totalorder %s23, 1
      %p156 = por %p154, %p155
      %p158 = scmp.ne.s32.totalorder %s141, %s157
      %p159 = scmp.eq.s32.totalorder %s23, 0
      %p160 = por %p158, %p159
      %p161 = scmp.le.s32.totalorder 1, %s17
      %p162 = scmp.lt.s32.totalorder %s17, 3
      %p163 = pnand %p161, %p162
      %p164 = pneg %p163
      // Predicated region
      $region9: #{tpu_custom_call.1} parent=5 // pred_check
        _
      $region10: #{tpu_custom_call.1} parent=5 // pred_check_branch
        %166 = sbr.rel (%p163) target = $region12
      $region11: #{tpu_custom_call.1} parent=5 // pred_region
        %s167 = ssub.s32 %s17, 1
        // Predicated region
        $region13: #{tpu_custom_call.1} parent=11 // pred_check
          %p168 = pneg %p64
        $region14: #{tpu_custom_call.1} parent=11 // pred_check_branch
          %170 = sbr.rel (%p168) target = $region16
        $region15: #{tpu_custom_call.1} parent=11 // pred_region
          _
        $region16: #{tpu_custom_call.1} parent=11 // pred_fallthru
          _
        // Predicated region
        $region17: #{tpu_custom_call.1} parent=11 // pred_check
          %p171 = pneg %p85
        $region18: #{tpu_custom_call.1} parent=11 // pred_check_branch
          %173 = sbr.rel (%p171) target = $region20
        $region19: #{tpu_custom_call.1} parent=11 // pred_region
          _
        $region20: #{tpu_custom_call.1} parent=11 // pred_fallthru
          _
        // Predicated region
        $region21: #{tpu_custom_call.1} parent=11 // pred_check
          %p174 = pneg %p106
        $region22: #{tpu_custom_call.1} parent=11 // pred_check_branch
          %176 = sbr.rel (%p174) target = $region24
        $region23: #{tpu_custom_call.1} parent=11 // pred_region
          _
        $region24: #{tpu_custom_call.1} parent=11 // pred_fallthru
          _
        // Predicated region
        $region25: #{tpu_custom_call.1} parent=11 // pred_check
          %p177 = pneg %p127
        $region26: #{tpu_custom_call.1} parent=11 // pred_check_branch
          %179 = sbr.rel (%p177) target = $region28
        $region27: #{tpu_custom_call.1} parent=11 // pred_region
          _
        $region28: #{tpu_custom_call.1} parent=11 // pred_fallthru
          _
      $region12: #{tpu_custom_call.1} parent=5 // pred_fallthru
        _
      %p180 = scmp.lt.s32.totalorder %s17, 2
      // Predicated region
      $region29: #{tpu_custom_call.1} parent=5 // pred_check
        %p181 = pneg %p180
      $region30: #{tpu_custom_call.1} parent=5 // pred_check_branch
        %183 = sbr.rel (%p181) target = $region32
      $region31: #{tpu_custom_call.1} parent=5 // pred_region
        // Predicated region
        $region33: #{tpu_custom_call.1} parent=31 // pred_check
          %p184 = pneg %p37
        $region34: #{tpu_custom_call.1} parent=31 // pred_check_branch
          %186 = sbr.rel (%p184) target = $region36
        $region35: #{tpu_custom_call.1} parent=31 // pred_region
          %s187 = sand.u32 %s27, 1
          %s188 = scalar_lea.sflag [#allocation3], %s187
          %s189 = sand.u32 %s27, 1
          %s190 = smul.addr %s189, 64
          %s191 = scalar_lea.vmem [#allocation2], %s190
          %s193 = ssub.s32 1024, 1024
          %194 = vsyncadd %s188, %s193
          %s195 = smul.addr %s17, 8
          %s196 = smul.addr %s195, 128
          %s197 = scalar_lea.hbm %s0, %s196
          %s198 = sshll.u32 %s191, 4
          %s199 = int_to_ptr.vmem [resolvable:$true] %s198
          %204 = dma.hbm_to_vmem [thread:$0]  %s197, 1024, %s199, %s188, 256, 256, 16
        $region36: #{tpu_custom_call.1} parent=31 // pred_fallthru
          _
      $region32: #{tpu_custom_call.1} parent=5 // pred_fallthru
        _
      %p205 = scmp.le.s32.totalorder 1, %s17
      %p206 = scmp.lt.s32.totalorder %s17, 3
      %p207 = pnand %p205, %p206
      %p208 = pneg %p207
      // Predicated region
      $region37: #{tpu_custom_call.1} parent=5 // pred_check
        _
      $region38: #{tpu_custom_call.1} parent=5 // pred_check_branch
        %210 = sbr.rel (%p207) target = $region40
      $region39: #{tpu_custom_call.1} parent=5 // pred_region
        %s211 = ssub.s32 %s17, 1
        %s212 = sand.u32 %s30, 1
        %s213 = scalar_lea.sflag [#allocation3], %s212
        %s214 = sand.u32 %s30, 1
        %s215 = smul.addr %s214, 64
        %s216 = scalar_lea.vmem [#allocation2], %s215
        // Predicated region
        $region41: #{tpu_custom_call.1} parent=39 // pred_check
          %p217 = pneg %p43
        $region42: #{tpu_custom_call.1} parent=39 // pred_check_branch
          %219 = sbr.rel (%p217) target = $region44
        $region43: #{tpu_custom_call.1} parent=39 // pred_region
          %220 = dma.done %s213, 1024
        $region44: #{tpu_custom_call.1} parent=39 // pred_fallthru
          _
        %s221 = sand.u32 %s30, 1
        %s222 = scalar_lea.sflag [#allocation3], %s221
        %s223 = sand.u32 %s30, 1
        %s224 = smul.addr %s223, 64
        %s225 = scalar_lea.vmem [#allocation2], %s224
        %p226 = pneg %p43
        %p227 = pneg %p40
        %p228 = pneg %p64
        %p229 = pneg %p61
        %p230 = pneg %p85
        %p231 = pneg %p82
        %p232 = pneg %p106
        %p233 = pneg %p103
        %p234 = pneg %p127
        %p235 = pneg %p124
        %p236 = pneg %p153
        %p237 = pneg %p150
        %s238 = sand.u32 %s140, 1
        %s239 = scalar_lea.sflag [#allocation4], %s238
        %s240 = sand.u32 %s140, 1
        %s241 = smul.addr %s240, 64
        %s242 = scalar_lea.vmem [#allocation5], %s241
        %v243 = vld [vmem:[%s216] sm:$0xff]
        %v244 = vld [vmem:[%s216 + $0x8] sm:$0xff]
        %v245 = vld [vmem:[%s216 + $0x10] sm:$0xff]
        %v246 = vld [vmem:[%s216 + $0x18] sm:$0xff]
        %v247 = vld [vmem:[%s216 + $0x20] sm:$0xff]
        %v248 = vld [vmem:[%s216 + $0x28] sm:$0xff]
        %v249 = vld [vmem:[%s216 + $0x30] sm:$0xff]
        %v250 = vld [vmem:[%s216 + $0x38] sm:$0xff]
        %v251 = vadd.f32 %v243, %v244
        %252 = vadd.xlane.f32.xlu0 %v251
        %v253 = vpop.xlane.xlu0 %252
        %v254 = vadd.f32 %v245, %v246
        %255 = vadd.xlane.f32.xlu0 %v254
        %v256 = vpop.xlane.xlu0 %255
        %v257 = vadd.f32 %v247, %v248
        %258 = vadd.xlane.f32.xlu0 %v257
        %v259 = vpop.xlane.xlu0 %258
        %v260 = vadd.f32 %v249, %v250
        %261 = vadd.xlane.f32.xlu0 %v260
        %v262 = vpop.xlane.xlu0 %261
        %v263 = vmul.f32 %v253, 0.00390625
        %v264 = vmul.f32 %v256, 0.00390625
        %v265 = vmul.f32 %v259, 0.00390625
        %v266 = vmul.f32 %v262, 0.00390625
        %v267 = vld [vmem:[%s1] sm:$0xf]
        %v268 = vld [vmem:[%s3] sm:$0xff]
        %v269 = vld [vmem:[%s3 + $0x8] sm:$0xff]
        %v270 = vld [vmem:[%s3 + $0x10] sm:$0xff]
        %v271 = vld [vmem:[%s3 + $0x18] sm:$0xff]
        %v273 = vlaneseq
        %v274 = vshrl.u32 %v273, 7
        %v275 = vsub.s32 0, %v274
        %v276 = vrot.slane %v267, %v275
        %278 = vbcast.lane.b32.xlu0 %v276, 256
        %v279 = vpop.permute.xlu0 %278
        %s281 = sor.u32 256, 8
        %282 = vbcast.lane.b32.xlu0 %v276, %s281
        %v283 = vpop.permute.xlu0 %282
        %s285 = sor.u32 256, 16
        %286 = vbcast.lane.b32.xlu0 %v276, %s285
        %v287 = vpop.permute.xlu0 %286
        %s289 = sor.u32 256, 24
        %290 = vbcast.lane.b32.xlu0 %v276, %s289
        %v291 = vpop.permute.xlu0 %290
        %v292 = vlaneseq
        %v293 = vshrl.u32 %v292, 7
        %v294 = vsub.s32 1, %v293
        %v295 = vrot.slane %v267, %v294
        %297 = vbcast.lane.b32.xlu0 %v295, 256
        %v298 = vpop.permute.xlu0 %297
        %s300 = sor.u32 256, 8
        %301 = vbcast.lane.b32.xlu0 %v295, %s300
        %v302 = vpop.permute.xlu0 %301
        %s304 = sor.u32 256, 16
        %305 = vbcast.lane.b32.xlu0 %v295, %s304
        %v306 = vpop.permute.xlu0 %305
        %s308 = sor.u32 256, 24
        %309 = vbcast.lane.b32.xlu0 %v295, %s308
        %v310 = vpop.permute.xlu0 %309
        %v311 = vlaneseq
        %v312 = vshrl.u32 %v311, 7
        %v313 = vsub.s32 2, %v312
        %v314 = vrot.slane %v267, %v313
        %316 = vbcast.lane.b32.xlu0 %v314, 256
        %v317 = vpop.permute.xlu0 %316
        %s319 = sor.u32 256, 8
        %320 = vbcast.lane.b32.xlu0 %v314, %s319
        %v321 = vpop.permute.xlu0 %320
        %s323 = sor.u32 256, 16
        %324 = vbcast.lane.b32.xlu0 %v314, %s323
        %v325 = vpop.permute.xlu0 %324
        %s327 = sor.u32 256, 24
        %328 = vbcast.lane.b32.xlu0 %v314, %s327
        %v329 = vpop.permute.xlu0 %328
        %v330 = vlaneseq
        %v331 = vshrl.u32 %v330, 7
        %v332 = vsub.s32 3, %v331
        %v333 = vrot.slane %v267, %v332
        %335 = vbcast.lane.b32.xlu0 %v333, 256
        %v336 = vpop.permute.xlu0 %335
        %s338 = sor.u32 256, 8
        %339 = vbcast.lane.b32.xlu0 %v333, %s338
        %v340 = vpop.permute.xlu0 %339
        %s342 = sor.u32 256, 16
        %343 = vbcast.lane.b32.xlu0 %v333, %s342
        %v344 = vpop.permute.xlu0 %343
        %s346 = sor.u32 256, 24
        %347 = vbcast.lane.b32.xlu0 %v333, %s346
        %v348 = vpop.permute.xlu0 %347
        %v365 = vmul.f32 %v263, %v279
        %v366 = vmul.f32 %v264, %v283
        %v367 = vmul.f32 %v265, %v287
        %v368 = vmul.f32 %v266, %v291
        %v369 = vmul.f32 %v263, %v298
        %v370 = vmul.f32 %v264, %v302
        %v371 = vmul.f32 %v265, %v306
        %v372 = vmul.f32 %v266, %v310
        %v373 = vmul.f32 %v263, %v317
        %v374 = vmul.f32 %v264, %v321
        %v375 = vmul.f32 %v265, %v325
        %v376 = vmul.f32 %v266, %v329
        %v377 = vmul.f32 %v263, %v336
        %v378 = vmul.f32 %v264, %v340
        %v379 = vmul.f32 %v265, %v344
        %v380 = vmul.f32 %v266, %v348
        %397 = vset.pattern.permute.xlu0 0
        %398 = vperm.xlu0 %397, %v365
        %v399 = vpop.permute.xlu0 %398
        %400 = vset.pattern.permute.xlu0 0
        %401 = vperm.xlu0 %400, %v366
        %v402 = vpop.permute.xlu0 %401
        %403 = vset.pattern.permute.xlu0 0
        %404 = vperm.xlu0 %403, %v367
        %v405 = vpop.permute.xlu0 %404
        %406 = vset.pattern.permute.xlu0 0
        %407 = vperm.xlu0 %406, %v368
        %v408 = vpop.permute.xlu0 %407
        %409 = vset.pattern.permute.xlu0 0
        %410 = vperm.xlu0 %409, %v369
        %v411 = vpop.permute.xlu0 %410
        %412 = vset.pattern.permute.xlu0 0
        %413 = vperm.xlu0 %412, %v370
        %v414 = vpop.permute.xlu0 %413
        %415 = vset.pattern.permute.xlu0 0
        %416 = vperm.xlu0 %415, %v371
        %v417 = vpop.permute.xlu0 %416
        %418 = vset.pattern.permute.xlu0 0
        %419 = vperm.xlu0 %418, %v372
        %v420 = vpop.permute.xlu0 %419
        %421 = vset.pattern.permute.xlu0 0
        %422 = vperm.xlu0 %421, %v373
        %v423 = vpop.permute.xlu0 %422
        %424 = vset.pattern.permute.xlu0 0
        %425 = vperm.xlu0 %424, %v374
        %v426 = vpop.permute.xlu0 %425
        %427 = vset.pattern.permute.xlu0 0
        %428 = vperm.xlu0 %427, %v375
        %v429 = vpop.permute.xlu0 %428
        %430 = vset.pattern.permute.xlu0 0
        %431 = vperm.xlu0 %430, %v376
        %v432 = vpop.permute.xlu0 %431
        %433 = vset.pattern.permute.xlu0 0
        %434 = vperm.xlu0 %433, %v377
        %v435 = vpop.permute.xlu0 %434
        %436 = vset.pattern.permute.xlu0 0
        %437 = vperm.xlu0 %436, %v378
        %v438 = vpop.permute.xlu0 %437
        %439 = vset.pattern.permute.xlu0 0
        %440 = vperm.xlu0 %439, %v379
        %v441 = vpop.permute.xlu0 %440
        %442 = vset.pattern.permute.xlu0 0
        %443 = vperm.xlu0 %442, %v380
        %v444 = vpop.permute.xlu0 %443
        %v445 = vlaneseq
        %v446 = vand.u32 %v445, 127
        %v447 = vlaneseq
        %v448 = vshrl.u32 %v447, 7
        %v449 = vsub.s32 %v446, %v448
        %v450 = vrot.slane %v399, %v449
        %v451 = vadd.s32 %v446, 4294967288
        %v452 = vlaneseq
        %v453 = vshrl.u32 %v452, 7
        %v454 = vsub.s32 %v451, %v453
        %v455 = vrot.slane %v402, %v454
        %vm456 = vcmask 130112
        %v457 = vsel %vm456, %v455, %v450
        %v458 = vadd.s32 %v446, 4294967280
        %v459 = vlaneseq
        %v460 = vshrl.u32 %v459, 7
        %v461 = vsub.s32 %v458, %v460
        %v462 = vrot.slane %v405, %v461
        %vm463 = vcmask 195712
        %v464 = vsel %vm463, %v462, %v457
        %v465 = vadd.s32 %v446, 4294967272
        %v466 = vlaneseq
        %v467 = vshrl.u32 %v466, 7
        %v468 = vsub.s32 %v465, %v467
        %v469 = vrot.slane %v408, %v468
        %vm470 = vcmask 261312
        %v471 = vsel %vm470, %v469, %v464
        %v472 = vlaneseq
        %v473 = vshrl.u32 %v472, 7
        %v474 = vsub.s32 %v446, %v473
        %v475 = vrot.slane %v411, %v474
        %v476 = vlaneseq
        %v477 = vshrl.u32 %v476, 7
        %v478 = vsub.s32 %v451, %v477
        %v479 = vrot.slane %v414, %v478
        %v480 = vsel %vm456, %v479, %v475
        %v481 = vlaneseq
        %v482 = vshrl.u32 %v481, 7
        %v483 = vsub.s32 %v458, %v482
        %v484 = vrot.slane %v417, %v483
        %v485 = vsel %vm463, %v484, %v480
        %v486 = vlaneseq
        %v487 = vshrl.u32 %v486, 7
        %v488 = vsub.s32 %v465, %v487
        %v489 = vrot.slane %v420, %v488
        %v490 = vsel %vm470, %v489, %v485
        %v491 = vlaneseq
        %v492 = vshrl.u32 %v491, 7
        %v493 = vsub.s32 %v446, %v492
        %v494 = vrot.slane %v423, %v493
        %v495 = vlaneseq
        %v496 = vshrl.u32 %v495, 7
        %v497 = vsub.s32 %v451, %v496
        %v498 = vrot.slane %v426, %v497
        %v499 = vsel %vm456, %v498, %v494
        %v500 = vlaneseq
        %v501 = vshrl.u32 %v500, 7
        %v502 = vsub.s32 %v458, %v501
        %v503 = vrot.slane %v429, %v502
        %v504 = vsel %vm463, %v503, %v499
        %v505 = vlaneseq
        %v506 = vshrl.u32 %v505, 7
        %v507 = vsub.s32 %v465, %v506
        %v508 = vrot.slane %v432, %v507
        %v509 = vsel %vm470, %v508, %v504
        %v510 = vlaneseq
        %v511 = vshrl.u32 %v510, 7
        %v512 = vsub.s32 %v446, %v511
        %v513 = vrot.slane %v435, %v512
        %v514 = vlaneseq
        %v515 = vshrl.u32 %v514, 7
        %v516 = vsub.s32 %v451, %v515
        %v517 = vrot.slane %v438, %v516
        %v518 = vsel %vm456, %v517, %v513
        %v519 = vlaneseq
        %v520 = vshrl.u32 %v519, 7
        %v521 = vsub.s32 %v458, %v520
        %v522 = vrot.slane %v441, %v521
        %v523 = vsel %vm463, %v522, %v518
        %v524 = vlaneseq
        %v525 = vshrl.u32 %v524, 7
        %v526 = vsub.s32 %v465, %v525
        %v527 = vrot.slane %v444, %v526
        %v528 = vsel %vm470, %v527, %v523
        %vm529 = vcmask 1041409
        %v530 = vsel %vm529, %v490, %v471
        %vm531 = vcmask 1042434
        %v532 = vsel %vm531, %v509, %v530
        %vm533 = vcmask 1043459
        %v534 = vsel %vm533, %v528, %v532
        %vm536 = vcmask 257024
        %v537 = vsel %vm536, %v534, 0.0
        %538 = vadd.xlane.f32.xlu0 %v537
        %v539 = vpop.xlane.xlu0 %538
        %v540 = vld [vmem:[%s2] sm:$0x1]
        %v542 = vlaneseq
        %v543 = vshrl.u32 %v542, 7
        %v544 = vsub.s32 0, %v543
        %v545 = vrot.slane %v540, %v544
        %547 = vbcast.lane.b32.xlu0 %v545, 256
        %v548 = vpop.permute.xlu0 %547
        %v550 = vadd.f32 %v539, %v548
        %v551 = vxor.u32 %v550, 2147483648
        %v552 = vmul.f32 %v551, 1.442695
        %v553 = vpow.pop %v552
        %v554 = vadd.f32 %v553, 1.0
        %v555 = vrcp.pop %v554
        %v556 = vmul.f32 1.0, %v555
        %v557 = vmul.f32 %v550, %v556
        %v562 = vlaneseq
        %v563 = vshrl.u32 %v562, 7
        %v564 = vsub.s32 0, %v563
        %v565 = vrot.slane %v268, %v564
        %567 = vbcast.lane.b32.xlu0 %v565, 256
        %v568 = vpop.permute.xlu0 %567
        %v569 = vlaneseq
        %v570 = vshrl.u32 %v569, 7
        %v571 = vsub.s32 1, %v570
        %v572 = vrot.slane %v268, %v571
        %574 = vbcast.lane.b32.xlu0 %v572, 256
        %v575 = vpop.permute.xlu0 %574
        %v576 = vlaneseq
        %v577 = vshrl.u32 %v576, 7
        %v578 = vsub.s32 2, %v577
        %v579 = vrot.slane %v268, %v578
        %581 = vbcast.lane.b32.xlu0 %v579, 256
        %v582 = vpop.permute.xlu0 %581
        %v583 = vlaneseq
        %v584 = vshrl.u32 %v583, 7
        %v585 = vsub.s32 3, %v584
        %v586 = vrot.slane %v268, %v585
        %588 = vbcast.lane.b32.xlu0 %v586, 256
        %v589 = vpop.permute.xlu0 %588
        %v590 = vlaneseq
        %v591 = vshrl.u32 %v590, 7
        %v592 = vsub.s32 4, %v591
        %v593 = vrot.slane %v268, %v592
        %595 = vbcast.lane.b32.xlu0 %v593, 256
        %v596 = vpop.permute.xlu0 %595
        %v597 = vlaneseq
        %v598 = vshrl.u32 %v597, 7
        %v599 = vsub.s32 5, %v598
        %v600 = vrot.slane %v268, %v599
        %602 = vbcast.lane.b32.xlu0 %v600, 256
        %v603 = vpop.permute.xlu0 %602
        %v604 = vlaneseq
        %v605 = vshrl.u32 %v604, 7
        %v606 = vsub.s32 6, %v605
        %v607 = vrot.slane %v268, %v606
        %609 = vbcast.lane.b32.xlu0 %v607, 256
        %v610 = vpop.permute.xlu0 %609
        %v611 = vlaneseq
        %v612 = vshrl.u32 %v611, 7
        %v613 = vsub.s32 7, %v612
        %v614 = vrot.slane %v268, %v613
        %616 = vbcast.lane.b32.xlu0 %v614, 256
        %v617 = vpop.permute.xlu0 %616
        %v618 = vlaneseq
        %v619 = vshrl.u32 %v618, 7
        %v620 = vsub.s32 0, %v619
        %v621 = vrot.slane %v269, %v620
        %623 = vbcast.lane.b32.xlu0 %v621, 256
        %v624 = vpop.permute.xlu0 %623
        %v625 = vlaneseq
        %v626 = vshrl.u32 %v625, 7
        %v627 = vsub.s32 1, %v626
        %v628 = vrot.slane %v269, %v627
        %630 = vbcast.lane.b32.xlu0 %v628, 256
        %v631 = vpop.permute.xlu0 %630
        %v632 = vlaneseq
        %v633 = vshrl.u32 %v632, 7
        %v634 = vsub.s32 2, %v633
        %v635 = vrot.slane %v269, %v634
        %637 = vbcast.lane.b32.xlu0 %v635, 256
        %v638 = vpop.permute.xlu0 %637
        %v639 = vlaneseq
        %v640 = vshrl.u32 %v639, 7
        %v641 = vsub.s32 3, %v640
        %v642 = vrot.slane %v269, %v641
        %644 = vbcast.lane.b32.xlu0 %v642, 256
        %v645 = vpop.permute.xlu0 %644
        %v646 = vlaneseq
        %v647 = vshrl.u32 %v646, 7
        %v648 = vsub.s32 4, %v647
        %v649 = vrot.slane %v269, %v648
        %651 = vbcast.lane.b32.xlu0 %v649, 256
        %v652 = vpop.permute.xlu0 %651
        %v653 = vlaneseq
        %v654 = vshrl.u32 %v653, 7
        %v655 = vsub.s32 5, %v654
        %v656 = vrot.slane %v269, %v655
        %658 = vbcast.lane.b32.xlu0 %v656, 256
        %v659 = vpop.permute.xlu0 %658
        %v660 = vlaneseq
        %v661 = vshrl.u32 %v660, 7
        %v662 = vsub.s32 6, %v661
        %v663 = vrot.slane %v269, %v662
        %665 = vbcast.lane.b32.xlu0 %v663, 256
        %v666 = vpop.permute.xlu0 %665
        %v667 = vlaneseq
        %v668 = vshrl.u32 %v667, 7
        %v669 = vsub.s32 7, %v668
        %v670 = vrot.slane %v269, %v669
        %672 = vbcast.lane.b32.xlu0 %v670, 256
        %v673 = vpop.permute.xlu0 %672
        %v674 = vlaneseq
        %v675 = vshrl.u32 %v674, 7
        %v676 = vsub.s32 0, %v675
        %v677 = vrot.slane %v270, %v676
        %679 = vbcast.lane.b32.xlu0 %v677, 256
        %v680 = vpop.permute.xlu0 %679
        %v681 = vlaneseq
        %v682 = vshrl.u32 %v681, 7
        %v683 = vsub.s32 1, %v682
        %v684 = vrot.slane %v270, %v683
        %686 = vbcast.lane.b32.xlu0 %v684, 256
        %v687 = vpop.permute.xlu0 %686
        %v688 = vlaneseq
        %v689 = vshrl.u32 %v688, 7
        %v690 = vsub.s32 2, %v689
        %v691 = vrot.slane %v270, %v690
        %693 = vbcast.lane.b32.xlu0 %v691, 256
        %v694 = vpop.permute.xlu0 %693
        %v695 = vlaneseq
        %v696 = vshrl.u32 %v695, 7
        %v697 = vsub.s32 3, %v696
        %v698 = vrot.slane %v270, %v697
        %700 = vbcast.lane.b32.xlu0 %v698, 256
        %v701 = vpop.permute.xlu0 %700
        %v702 = vlaneseq
        %v703 = vshrl.u32 %v702, 7
        %v704 = vsub.s32 4, %v703
        %v705 = vrot.slane %v270, %v704
        %707 = vbcast.lane.b32.xlu0 %v705, 256
        %v708 = vpop.permute.xlu0 %707
        %v709 = vlaneseq
        %v710 = vshrl.u32 %v709, 7
        %v711 = vsub.s32 5, %v710
        %v712 = vrot.slane %v270, %v711
        %714 = vbcast.lane.b32.xlu0 %v712, 256
        %v715 = vpop.permute.xlu0 %714
        %v716 = vlaneseq
        %v717 = vshrl.u32 %v716, 7
        %v718 = vsub.s32 6, %v717
        %v719 = vrot.slane %v270, %v718
        %721 = vbcast.lane.b32.xlu0 %v719, 256
        %v722 = vpop.permute.xlu0 %721
        %v723 = vlaneseq
        %v724 = vshrl.u32 %v723, 7
        %v725 = vsub.s32 7, %v724
        %v726 = vrot.slane %v270, %v725
        %728 = vbcast.lane.b32.xlu0 %v726, 256
        %v729 = vpop.permute.xlu0 %728
        %v730 = vlaneseq
        %v731 = vshrl.u32 %v730, 7
        %v732 = vsub.s32 0, %v731
        %v733 = vrot.slane %v271, %v732
        %735 = vbcast.lane.b32.xlu0 %v733, 256
        %v736 = vpop.permute.xlu0 %735
        %v737 = vlaneseq
        %v738 = vshrl.u32 %v737, 7
        %v739 = vsub.s32 1, %v738
        %v740 = vrot.slane %v271, %v739
        %742 = vbcast.lane.b32.xlu0 %v740, 256
        %v743 = vpop.permute.xlu0 %742
        %v744 = vlaneseq
        %v745 = vshrl.u32 %v744, 7
        %v746 = vsub.s32 2, %v745
        %v747 = vrot.slane %v271, %v746
        %749 = vbcast.lane.b32.xlu0 %v747, 256
        %v750 = vpop.permute.xlu0 %749
        %v751 = vlaneseq
        %v752 = vshrl.u32 %v751, 7
        %v753 = vsub.s32 3, %v752
        %v754 = vrot.slane %v271, %v753
        %756 = vbcast.lane.b32.xlu0 %v754, 256
        %v757 = vpop.permute.xlu0 %756
        %v758 = vlaneseq
        %v759 = vshrl.u32 %v758, 7
        %v760 = vsub.s32 4, %v759
        %v761 = vrot.slane %v271, %v760
        %763 = vbcast.lane.b32.xlu0 %v761, 256
        %v764 = vpop.permute.xlu0 %763
        %v765 = vlaneseq
        %v766 = vshrl.u32 %v765, 7
        %v767 = vsub.s32 5, %v766
        %v768 = vrot.slane %v271, %v767
        %770 = vbcast.lane.b32.xlu0 %v768, 256
        %v771 = vpop.permute.xlu0 %770
        %v772 = vlaneseq
        %v773 = vshrl.u32 %v772, 7
        %v774 = vsub.s32 6, %v773
        %v775 = vrot.slane %v271, %v774
        %777 = vbcast.lane.b32.xlu0 %v775, 256
        %v778 = vpop.permute.xlu0 %777
        %v779 = vlaneseq
        %v780 = vshrl.u32 %v779, 7
        %v781 = vsub.s32 7, %v780
        %v782 = vrot.slane %v271, %v781
        %784 = vbcast.lane.b32.xlu0 %v782, 256
        %v785 = vpop.permute.xlu0 %784
        %v818 = vmul.f32 %v557, %v568
        %v819 = vmul.f32 %v557, %v575
        %v820 = vmul.f32 %v557, %v582
        %v821 = vmul.f32 %v557, %v589
        %v822 = vmul.f32 %v557, %v596
        %v823 = vmul.f32 %v557, %v603
        %v824 = vmul.f32 %v557, %v610
        %v825 = vmul.f32 %v557, %v617
        %v826 = vmul.f32 %v557, %v624
        %v827 = vmul.f32 %v557, %v631
        %v828 = vmul.f32 %v557, %v638
        %v829 = vmul.f32 %v557, %v645
        %v830 = vmul.f32 %v557, %v652
        %v831 = vmul.f32 %v557, %v659
        %v832 = vmul.f32 %v557, %v666
        %v833 = vmul.f32 %v557, %v673
        %v834 = vmul.f32 %v557, %v680
        %v835 = vmul.f32 %v557, %v687
        %v836 = vmul.f32 %v557, %v694
        %v837 = vmul.f32 %v557, %v701
        %v838 = vmul.f32 %v557, %v708
        %v839 = vmul.f32 %v557, %v715
        %v840 = vmul.f32 %v557, %v722
        %v841 = vmul.f32 %v557, %v729
        %v842 = vmul.f32 %v557, %v736
        %v843 = vmul.f32 %v557, %v743
        %v844 = vmul.f32 %v557, %v750
        %v845 = vmul.f32 %v557, %v757
        %v846 = vmul.f32 %v557, %v764
        %v847 = vmul.f32 %v557, %v771
        %v848 = vmul.f32 %v557, %v778
        %v849 = vmul.f32 %v557, %v785
        %882 = vset.pattern.permute.xlu0 0
        %883 = vperm.xlu0 %882, %v818
        %v884 = vpop.permute.xlu0 %883
        %885 = vset.pattern.permute.xlu0 0
        %886 = vperm.xlu0 %885, %v819
        %v887 = vpop.permute.xlu0 %886
        %888 = vset.pattern.permute.xlu0 0
        %889 = vperm.xlu0 %888, %v820
        %v890 = vpop.permute.xlu0 %889
        %891 = vset.pattern.permute.xlu0 0
        %892 = vperm.xlu0 %891, %v821
        %v893 = vpop.permute.xlu0 %892
        %894 = vset.pattern.permute.xlu0 0
        %895 = vperm.xlu0 %894, %v822
        %v896 = vpop.permute.xlu0 %895
        %897 = vset.pattern.permute.xlu0 0
        %898 = vperm.xlu0 %897, %v823
        %v899 = vpop.permute.xlu0 %898
        %900 = vset.pattern.permute.xlu0 0
        %901 = vperm.xlu0 %900, %v824
        %v902 = vpop.permute.xlu0 %901
        %903 = vset.pattern.permute.xlu0 0
        %904 = vperm.xlu0 %903, %v825
        %v905 = vpop.permute.xlu0 %904
        %906 = vset.pattern.permute.xlu0 0
        %907 = vperm.xlu0 %906, %v826
        %v908 = vpop.permute.xlu0 %907
        %909 = vset.pattern.permute.xlu0 0
        %910 = vperm.xlu0 %909, %v827
        %v911 = vpop.permute.xlu0 %910
        %912 = vset.pattern.permute.xlu0 0
        %913 = vperm.xlu0 %912, %v828
        %v914 = vpop.permute.xlu0 %913
        %915 = vset.pattern.permute.xlu0 0
        %916 = vperm.xlu0 %915, %v829
        %v917 = vpop.permute.xlu0 %916
        %918 = vset.pattern.permute.xlu0 0
        %919 = vperm.xlu0 %918, %v830
        %v920 = vpop.permute.xlu0 %919
        %921 = vset.pattern.permute.xlu0 0
        %922 = vperm.xlu0 %921, %v831
        %v923 = vpop.permute.xlu0 %922
        %924 = vset.pattern.permute.xlu0 0
        %925 = vperm.xlu0 %924, %v832
        %v926 = vpop.permute.xlu0 %925
        %927 = vset.pattern.permute.xlu0 0
        %928 = vperm.xlu0 %927, %v833
        %v929 = vpop.permute.xlu0 %928
        %930 = vset.pattern.permute.xlu0 0
        %931 = vperm.xlu0 %930, %v834
        %v932 = vpop.permute.xlu0 %931
        %933 = vset.pattern.permute.xlu0 0
        %934 = vperm.xlu0 %933, %v835
        %v935 = vpop.permute.xlu0 %934
        %936 = vset.pattern.permute.xlu0 0
        %937 = vperm.xlu0 %936, %v836
        %v938 = vpop.permute.xlu0 %937
        %939 = vset.pattern.permute.xlu0 0
        %940 = vperm.xlu0 %939, %v837
        %v941 = vpop.permute.xlu0 %940
        %942 = vset.pattern.permute.xlu0 0
        %943 = vperm.xlu0 %942, %v838
        %v944 = vpop.permute.xlu0 %943
        %945 = vset.pattern.permute.xlu0 0
        %946 = vperm.xlu0 %945, %v839
        %v947 = vpop.permute.xlu0 %946
        %948 = vset.pattern.permute.xlu0 0
        %949 = vperm.xlu0 %948, %v840
        %v950 = vpop.permute.xlu0 %949
        %951 = vset.pattern.permute.xlu0 0
        %952 = vperm.xlu0 %951, %v841
        %v953 = vpop.permute.xlu0 %952
        %954 = vset.pattern.permute.xlu0 0
        %955 = vperm.xlu0 %954, %v842
        %v956 = vpop.permute.xlu0 %955
        %957 = vset.pattern.permute.xlu0 0
        %958 = vperm.xlu0 %957, %v843
        %v959 = vpop.permute.xlu0 %958
        %960 = vset.pattern.permute.xlu0 0
        %961 = vperm.xlu0 %960, %v844
        %v962 = vpop.permute.xlu0 %961
        %963 = vset.pattern.permute.xlu0 0
        %964 = vperm.xlu0 %963, %v845
        %v965 = vpop.permute.xlu0 %964
        %966 = vset.pattern.permute.xlu0 0
        %967 = vperm.xlu0 %966, %v846
        %v968 = vpop.permute.xlu0 %967
        %969 = vset.pattern.permute.xlu0 0
        %970 = vperm.xlu0 %969, %v847
        %v971 = vpop.permute.xlu0 %970
        %972 = vset.pattern.permute.xlu0 0
        %973 = vperm.xlu0 %972, %v848
        %v974 = vpop.permute.xlu0 %973
        %975 = vset.pattern.permute.xlu0 0
        %976 = vperm.xlu0 %975, %v849
        %v977 = vpop.permute.xlu0 %976
        %v978 = vlaneseq
        %v979 = vshrl.u32 %v978, 7
        %v980 = vsub.s32 %v446, %v979
        %v981 = vrot.slane %v884, %v980
        %v982 = vlaneseq
        %v983 = vshrl.u32 %v982, 7
        %v984 = vsub.s32 %v446, %v983
        %v985 = vrot.slane %v887, %v984
        %v986 = vlaneseq
        %v987 = vshrl.u32 %v986, 7
        %v988 = vsub.s32 %v446, %v987
        %v989 = vrot.slane %v890, %v988
        %v990 = vlaneseq
        %v991 = vshrl.u32 %v990, 7
        %v992 = vsub.s32 %v446, %v991
        %v993 = vrot.slane %v893, %v992
        %v994 = vlaneseq
        %v995 = vshrl.u32 %v994, 7
        %v996 = vsub.s32 %v446, %v995
        %v997 = vrot.slane %v896, %v996
        %v998 = vlaneseq
        %v999 = vshrl.u32 %v998, 7
        %v1000 = vsub.s32 %v446, %v999
        %v1001 = vrot.slane %v899, %v1000
        %v1002 = vlaneseq
        %v1003 = vshrl.u32 %v1002, 7
        %v1004 = vsub.s32 %v446, %v1003
        %v1005 = vrot.slane %v902, %v1004
        %v1006 = vlaneseq
        %v1007 = vshrl.u32 %v1006, 7
        %v1008 = vsub.s32 %v446, %v1007
        %v1009 = vrot.slane %v905, %v1008
        %v1010 = vlaneseq
        %v1011 = vshrl.u32 %v1010, 7
        %v1012 = vsub.s32 %v446, %v1011
        %v1013 = vrot.slane %v908, %v1012
        %v1014 = vlaneseq
        %v1015 = vshrl.u32 %v1014, 7
        %v1016 = vsub.s32 %v446, %v1015
        %v1017 = vrot.slane %v911, %v1016
        %v1018 = vlaneseq
        %v1019 = vshrl.u32 %v1018, 7
        %v1020 = vsub.s32 %v446, %v1019
        %v1021 = vrot.slane %v914, %v1020
        %v1022 = vlaneseq
        %v1023 = vshrl.u32 %v1022, 7
        %v1024 = vsub.s32 %v446, %v1023
        %v1025 = vrot.slane %v917, %v1024
        %v1026 = vlaneseq
        %v1027 = vshrl.u32 %v1026, 7
        %v1028 = vsub.s32 %v446, %v1027
        %v1029 = vrot.slane %v920, %v1028
        %v1030 = vlaneseq
        %v1031 = vshrl.u32 %v1030, 7
        %v1032 = vsub.s32 %v446, %v1031
        %v1033 = vrot.slane %v923, %v1032
        %v1034 = vlaneseq
        %v1035 = vshrl.u32 %v1034, 7
        %v1036 = vsub.s32 %v446, %v1035
        %v1037 = vrot.slane %v926, %v1036
        %v1038 = vlaneseq
        %v1039 = vshrl.u32 %v1038, 7
        %v1040 = vsub.s32 %v446, %v1039
        %v1041 = vrot.slane %v929, %v1040
        %v1042 = vlaneseq
        %v1043 = vshrl.u32 %v1042, 7
        %v1044 = vsub.s32 %v446, %v1043
        %v1045 = vrot.slane %v932, %v1044
        %v1046 = vlaneseq
        %v1047 = vshrl.u32 %v1046, 7
        %v1048 = vsub.s32 %v446, %v1047
        %v1049 = vrot.slane %v935, %v1048
        %v1050 = vlaneseq
        %v1051 = vshrl.u32 %v1050, 7
        %v1052 = vsub.s32 %v446, %v1051
        %v1053 = vrot.slane %v938, %v1052
        %v1054 = vlaneseq
        %v1055 = vshrl.u32 %v1054, 7
        %v1056 = vsub.s32 %v446, %v1055
        %v1057 = vrot.slane %v941, %v1056
        %v1058 = vlaneseq
        %v1059 = vshrl.u32 %v1058, 7
        %v1060 = vsub.s32 %v446, %v1059
        %v1061 = vrot.slane %v944, %v1060
        %v1062 = vlaneseq
        %v1063 = vshrl.u32 %v1062, 7
        %v1064 = vsub.s32 %v446, %v1063
        %v1065 = vrot.slane %v947, %v1064
        %v1066 = vlaneseq
        %v1067 = vshrl.u32 %v1066, 7
        %v1068 = vsub.s32 %v446, %v1067
        %v1069 = vrot.slane %v950, %v1068
        %v1070 = vlaneseq
        %v1071 = vshrl.u32 %v1070, 7
        %v1072 = vsub.s32 %v446, %v1071
        %v1073 = vrot.slane %v953, %v1072
        %v1074 = vlaneseq
        %v1075 = vshrl.u32 %v1074, 7
        %v1076 = vsub.s32 %v446, %v1075
        %v1077 = vrot.slane %v956, %v1076
        %v1078 = vlaneseq
        %v1079 = vshrl.u32 %v1078, 7
        %v1080 = vsub.s32 %v446, %v1079
        %v1081 = vrot.slane %v959, %v1080
        %v1082 = vlaneseq
        %v1083 = vshrl.u32 %v1082, 7
        %v1084 = vsub.s32 %v446, %v1083
        %v1085 = vrot.slane %v962, %v1084
        %v1086 = vlaneseq
        %v1087 = vshrl.u32 %v1086, 7
        %v1088 = vsub.s32 %v446, %v1087
        %v1089 = vrot.slane %v965, %v1088
        %v1090 = vlaneseq
        %v1091 = vshrl.u32 %v1090, 7
        %v1092 = vsub.s32 %v446, %v1091
        %v1093 = vrot.slane %v968, %v1092
        %v1094 = vlaneseq
        %v1095 = vshrl.u32 %v1094, 7
        %v1096 = vsub.s32 %v446, %v1095
        %v1097 = vrot.slane %v971, %v1096
        %v1098 = vlaneseq
        %v1099 = vshrl.u32 %v1098, 7
        %v1100 = vsub.s32 %v446, %v1099
        %v1101 = vrot.slane %v974, %v1100
        %v1102 = vlaneseq
        %v1103 = vshrl.u32 %v1102, 7
        %v1104 = vsub.s32 %v446, %v1103
        %v1105 = vrot.slane %v977, %v1104
        %v1106 = vsel %vm529, %v985, %v981
        %v1107 = vsel %vm531, %v989, %v1106
        %v1108 = vsel %vm533, %v993, %v1107
        %vm1109 = vcmask 1044484
        %v1110 = vsel %vm1109, %v997, %v1108
        %vm1111 = vcmask 1045509
        %v1112 = vsel %vm1111, %v1001, %v1110
        %vm1113 = vcmask 1046534
        %v1114 = vsel %vm1113, %v1005, %v1112
        %vm1115 = vcmask 1047559
        %v1116 = vsel %vm1115, %v1009, %v1114
        %v1117 = vsel %vm529, %v1017, %v1013
        %v1118 = vsel %vm531, %v1021, %v1117
        %v1119 = vsel %vm533, %v1025, %v1118
        %v1120 = vsel %vm1109, %v1029, %v1119
        %v1121 = vsel %vm1111, %v1033, %v1120
        %v1122 = vsel %vm1113, %v1037, %v1121
        %v1123 = vsel %vm1115, %v1041, %v1122
        %v1124 = vsel %vm529, %v1049, %v1045
        %v1125 = vsel %vm531, %v1053, %v1124
        %v1126 = vsel %vm533, %v1057, %v1125
        %v1127 = vsel %vm1109, %v1061, %v1126
        %v1128 = vsel %vm1111, %v1065, %v1127
        %v1129 = vsel %vm1113, %v1069, %v1128
        %v1130 = vsel %vm1115, %v1073, %v1129
        %v1131 = vsel %vm529, %v1081, %v1077
        %v1132 = vsel %vm531, %v1085, %v1131
        %v1133 = vsel %vm533, %v1089, %v1132
        %v1134 = vsel %vm1109, %v1093, %v1133
        %v1135 = vsel %vm1111, %v1097, %v1134
        %v1136 = vsel %vm1113, %v1101, %v1135
        %v1137 = vsel %vm1115, %v1105, %v1136
        %vm1142 = vcmask 31744
        %v1143 = vsel %vm1142, %v1116, 0.0
        %1144 = vadd.xlane.f32.xlu0 %v1143
        %v1145 = vpop.xlane.xlu0 %1144
        %v1146 = vsel %vm1142, %v1123, 0.0
        %1147 = vadd.xlane.f32.xlu0 %v1146
        %v1148 = vpop.xlane.xlu0 %1147
        %v1149 = vsel %vm1142, %v1130, 0.0
        %1150 = vadd.xlane.f32.xlu0 %v1149
        %v1151 = vpop.xlane.xlu0 %1150
        %v1152 = vsel %vm1142, %v1137, 0.0
        %1153 = vadd.xlane.f32.xlu0 %v1152
        %v1154 = vpop.xlane.xlu0 %1153
        %v1155 = vld [vmem:[%s4] sm:$0x1]
        %v1157 = vlaneseq
        %v1158 = vshrl.u32 %v1157, 7
        %v1159 = vsub.s32 0, %v1158
        %v1160 = vrot.slane %v1155, %v1159
        %1162 = vbcast.lane.b32.xlu0 %v1160, 256
        %v1163 = vpop.permute.xlu0 %1162
        %s1165 = sor.u32 256, 8
        %1166 = vbcast.lane.b32.xlu0 %v1160, %s1165
        %v1167 = vpop.permute.xlu0 %1166
        %s1169 = sor.u32 256, 16
        %1170 = vbcast.lane.b32.xlu0 %v1160, %s1169
        %v1171 = vpop.permute.xlu0 %1170
        %s1173 = sor.u32 256, 24
        %1174 = vbcast.lane.b32.xlu0 %v1160, %s1173
        %v1175 = vpop.permute.xlu0 %1174
        %v1180 = vadd.f32 %v1145, %v1163
        %v1181 = vadd.f32 %v1148, %v1167
        %v1182 = vadd.f32 %v1151, %v1171
        %v1183 = vadd.f32 %v1154, %v1175
        %v1184 = vxor.u32 %v1180, 2147483648
        %v1185 = vxor.u32 %v1181, 2147483648
        %v1186 = vxor.u32 %v1182, 2147483648
        %v1187 = vxor.u32 %v1183, 2147483648
        %v1188 = vmul.f32 %v1184, 1.442695
        %v1189 = vpow.pop %v1188
        %v1190 = vmul.f32 %v1185, 1.442695
        %v1191 = vpow.pop %v1190
        %v1192 = vmul.f32 %v1186, 1.442695
        %v1193 = vpow.pop %v1192
        %v1194 = vmul.f32 %v1187, 1.442695
        %v1195 = vpow.pop %v1194
        %v1196 = vadd.f32 %v1189, 1.0
        %v1197 = vadd.f32 %v1191, 1.0
        %v1198 = vadd.f32 %v1193, 1.0
        %v1199 = vadd.f32 %v1195, 1.0
        %v1200 = vrcp.pop %v1196
        %v1201 = vmul.f32 1.0, %v1200
        %v1202 = vrcp.pop %v1197
        %v1203 = vmul.f32 1.0, %v1202
        %v1204 = vrcp.pop %v1198
        %v1205 = vmul.f32 1.0, %v1204
        %v1206 = vrcp.pop %v1199
        %v1207 = vmul.f32 1.0, %v1206
        %1209 = vset.pattern.permute.xlu0 0
        %1210 = vperm.xlu0 %1209, %v1201
        %v1211 = vpop.permute.xlu0 %1210
        %1214 = vset.pattern.permute.xlu0 0
        %1215 = vperm.xlu0 %1214, %v1203
        %v1216 = vpop.permute.xlu0 %1215
        %1219 = vset.pattern.permute.xlu0 0
        %1220 = vperm.xlu0 %1219, %v1205
        %v1221 = vpop.permute.xlu0 %1220
        %1224 = vset.pattern.permute.xlu0 0
        %1225 = vperm.xlu0 %1224, %v1207
        %v1226 = vpop.permute.xlu0 %1225
        %v1228 = vmul.f32 %v243, %v1211
        %v1229 = vmul.f32 %v244, %v1211
        %v1230 = vmul.f32 %v245, %v1216
        %v1231 = vmul.f32 %v246, %v1216
        %v1232 = vmul.f32 %v247, %v1221
        %v1233 = vmul.f32 %v248, %v1221
        %v1234 = vmul.f32 %v249, %v1226
        %v1235 = vmul.f32 %v250, %v1226
        %1236 = vst [vmem:[%s242] sm:$0xff] %v1228
        %1237 = vst [vmem:[%s242 + $0x8] sm:$0xff] %v1229
        %1238 = vst [vmem:[%s242 + $0x10] sm:$0xff] %v1230
        %1239 = vst [vmem:[%s242 + $0x18] sm:$0xff] %v1231
        %1240 = vst [vmem:[%s242 + $0x20] sm:$0xff] %v1232
        %1241 = vst [vmem:[%s242 + $0x28] sm:$0xff] %v1233
        %1242 = vst [vmem:[%s242 + $0x30] sm:$0xff] %v1234
        %1243 = vst [vmem:[%s242 + $0x38] sm:$0xff] %v1235
        %s1244 = sand.u32 %s140, 1
        %s1245 = scalar_lea.sflag [#allocation4], %s1244
        %s1246 = sand.u32 %s140, 1
        %s1247 = smul.addr %s1246, 64
        %s1248 = scalar_lea.vmem [#allocation5], %s1247
        // Predicated region
        $region45: #{tpu_custom_call.1} parent=39 // pred_check
          %p1249 = pneg %p150
        $region46: #{tpu_custom_call.1} parent=39 // pred_check_branch
          %1251 = sbr.rel (%p1249) target = $region48
        $region47: #{tpu_custom_call.1} parent=39 // pred_region
          %s1253 = ssub.s32 1024, 1024
          %1254 = vsyncadd %s1245, %s1253
          %s1255 = smul.addr %s22, 8
          %s1256 = smul.addr %s1255, 128
          %s1257 = scalar_lea.hbm %s5, %s1256
          %s1258 = sshll.u32 %s1248, 4
          %s1259 = int_to_ptr.vmem [resolvable:$true] %s1258
          %1264 = dma.vmem_to_hbm [thread:$0]  %s1259, 1024, %s1257, %s1245, 256, 256, 16
        $region48: #{tpu_custom_call.1} parent=39 // pred_fallthru
          _
      $region40: #{tpu_custom_call.1} parent=5 // pred_fallthru
        _
      %p1265 = scmp.le.s32.totalorder 2, %s17
      // Predicated region
      $region49: #{tpu_custom_call.1} parent=5 // pred_check
        %p1266 = pneg %p1265
      $region50: #{tpu_custom_call.1} parent=5 // pred_check_branch
        %1268 = sbr.rel (%p1266) target = $region52
      $region51: #{tpu_custom_call.1} parent=5 // pred_region
        %s1269 = ssub.s32 %s17, 2
        // Predicated region
        $region53: #{tpu_custom_call.1} parent=51 // pred_check
          %p1270 = pneg %p156
        $region54: #{tpu_custom_call.1} parent=51 // pred_check_branch
          %1272 = sbr.rel (%p1270) target = $region56
        $region55: #{tpu_custom_call.1} parent=51 // pred_region
          %s1273 = sand.u32 %s141, 1
          %s1274 = scalar_lea.sflag [#allocation4], %s1273
          %s1275 = sand.u32 %s141, 1
          %s1276 = smul.addr %s1275, 64
          %s1277 = scalar_lea.vmem [#allocation5], %s1276
          %1278 = dma.done %s1274, 1024
        $region56: #{tpu_custom_call.1} parent=51 // pred_fallthru
          _
      $region52: #{tpu_custom_call.1} parent=5 // pred_fallthru
        _
    $region6: #{tpu_custom_call.1} parent=1 // loop_footer
      %s21 = sadd.s32 1, %s17
    $region7: #{tpu_custom_call.1} parent=1 // loop_footer_branch
      %16 = sbr.rel target = $region3
    $region8: #{tpu_custom_call.1} parent=1 // loop_exit
      _
    %1279 = vsyncpa [#allocation3], 1
    %s1280 = scalar_lea.sflag [#allocation3], 1
    %1281 = vsyncpa %s1280, 1
    %1282 = vsyncpa [#allocation4], 1
    %s1283 = scalar_lea.sflag [#allocation4], 1
    %1284 = vsyncpa %s1283, 1

</llo_original>
